<compile_context>
chip_gen: v7x
topology: tpu7x:2x2x1
jax: 0.10.0
libtpu: 0.0.40
codegen_flags: <defaults>
</compile_context>

<pallas_src>
import functools

import jax
import jax.numpy as jnp
from jax.experimental import pallas as pl
from jax.experimental.pallas import tpu as pltpu


# ---------------------------------------------------------------------------
# Fused MLP kernel: Linear (+bias) [-> ReLU -> Dropout] ... -> Linear (+bias)
# ---------------------------------------------------------------------------

def _fused_mlp_kernel(*refs, n_layers, n_drop, drop_threshold, drop_scale):
    x_ref = refs[0]
    w_refs = refs[1:1 + n_layers]
    b_refs = refs[1 + n_layers:1 + 2 * n_layers]
    bits_refs = refs[1 + 2 * n_layers:1 + 2 * n_layers + n_drop]
    o_ref = refs[1 + 2 * n_layers + n_drop]

    h = x_ref[...]
    for i in range(n_layers):
        # MXU matmul with f32 accumulation; bias added in f32.
        h = jnp.dot(h, w_refs[i][...], preferred_element_type=jnp.float32)
        h = h + b_refs[i][...].astype(jnp.float32)
        if i < n_layers - 1:
            h = jnp.maximum(h, 0.0)                         # ReLU
            if n_drop:                                      # inverted dropout
                keep = bits_refs[i][...] >= jnp.uint32(drop_threshold)
                h = jnp.where(keep, h * jnp.float32(drop_scale),
                              jnp.zeros_like(h))
            # Keep MXU inputs narrow on the bf16 path (next matmul's dtype).
            h = h.astype(w_refs[i + 1].dtype)
    o_ref[...] = h.astype(o_ref.dtype)


def _dropout_threshold(p: float) -> int:
    # keep iff bits >= threshold  =>  P(keep) = 1 - p  (bits uniform [0, 2^32))
    return min(int(round(p * float(2 ** 32))), 2 ** 32 - 1)


def mlp_forward(x, weights, biases, *, drop_prob=0.0, bits=None,
                block_m=256, compute_dtype=None):
    """Fused MLP forward: one pallas_call for all layers (+ optional dropout).

    x       : (M, D_in)
    weights : list of (D_i, D_{i+1}) arrays
    biases  : list of (D_{i+1},) arrays
    bits    : optional list of (M, hidden_i) uint32 arrays (training dropout)
    """
    assert x.ndim == 2
    M, D = x.shape
    n_layers = len(weights)
    out_dtype = x.dtype
    n_out = int(weights[-1].shape[1])

    use_dropout = bits is not None and drop_prob > 0.0 and n_layers > 1
    if use_dropout:
        assert 0.0 < drop_prob < 1.0
        assert len(bits) == n_layers - 1
    n_drop = n_layers - 1 if use_dropout else 0

    if compute_dtype is not None:
        x = x.astype(compute_dtype)
        weights = [w.astype(compute_dtype) for w in weights]
    weights = list(weights)

    # --- batch tiling: grid only over M; weights stay resident in VMEM ------
    if M <= block_m:
        tm, m_pad = M, M                      # full dim -> always a legal block
    else:
        tm = max(block_m - (block_m % 8), 8)  # sublane-aligned tile (< M)
        m_pad = pl.cdiv(M, tm) * tm
        if m_pad != M:
            pad = m_pad - M
            x = jnp.pad(x, ((0, pad), (0, 0)))
            if use_dropout:
                bits = [jnp.pad(b, ((0, pad), (0, 0))) for b in bits]
    grid = (m_pad // tm,)

    b2 = [b.reshape(1, -1) for b in biases]

    in_specs = [pl.BlockSpec((tm, D), lambda i: (i, 0))]
    in_specs += [pl.BlockSpec(tuple(w.shape), lambda i: (0, 0)) for w in weights]
    in_specs += [pl.BlockSpec(tuple(b.shape), lambda i: (0, 0)) for b in b2]
    args = [x] + weights + b2
    if use_dropout:
        in_specs += [pl.BlockSpec((tm, int(bb.shape[1])), lambda i: (i, 0))
                     for bb in bits]
        args += list(bits)

    flops = 2 * m_pad * sum(int(w.shape[0]) * int(w.shape[1]) for w in weights)
    bytes_accessed = (sum(int(a.size) * a.dtype.itemsize for a in args)
                      + m_pad * n_out * jnp.dtype(out_dtype).itemsize)

    kernel = functools.partial(
        _fused_mlp_kernel, n_layers=n_layers, n_drop=n_drop,
        drop_threshold=_dropout_threshold(drop_prob) if use_dropout else 0,
        drop_scale=(1.0 / (1.0 - drop_prob)) if use_dropout else 1.0)

    out = pl.pallas_call(
        kernel,
        out_shape=jax.ShapeDtypeStruct((m_pad, n_out), out_dtype),
        grid=grid,
        in_specs=in_specs,
        out_specs=pl.BlockSpec((tm, n_out), lambda i: (i, 0)),
        compiler_params=pltpu.CompilerParams(
            dimension_semantics=("parallel",)),
        cost_estimate=pl.CostEstimate(
            flops=flops, transcendentals=0, bytes_accessed=bytes_accessed),
    )(*args)
    return out[:M] if m_pad != M else out


# ---------------------------------------------------------------------------
# MLP module (JAX mirror of mrl.utils.networks.MLP)
# ---------------------------------------------------------------------------

class MLP:
    """Feedforward net: Linear -> ReLU [-> Dropout] -> ... -> Linear.

    Mirrors the PyTorch module with its default norm=Identity / activ=ReLU.
    Weights use orthogonal init (w_scale=1.0) and zero bias, as in layer_init.
    """
    # TODO(synk): non-Identity `norm` (e.g. LayerNorm) and non-ReLU `activ`
    # are not implemented; only the spec defaults (Identity / ReLU) are.

    def __init__(self, input_size, output_size=1, hidden_sizes=(256, 256),
                 drop_prob=0.0, *, key, dtype=jnp.float32,
                 block_m=256, compute_dtype=None):
        layer_sizes = (input_size,) + tuple(hidden_sizes) + (output_size,)
        self.single_linear = len(layer_sizes) == 2   # spec: one bias-free Linear
        self.drop_prob = float(drop_prob)
        self.block_m = int(block_m)
        self.compute_dtype = compute_dtype

        ortho = jax.nn.initializers.orthogonal(scale=1.0)
        keys = jax.random.split(key, len(layer_sizes) - 1)
        self.weights, self.biases = [], []
        for k, d_in, d_out in zip(keys, layer_sizes[:-1], layer_sizes[1:]):
            self.weights.append(ortho(k, (d_in, d_out), dtype))
            self.biases.append(jnp.zeros((d_out,), dtype))

    def __call__(self, x, *, training=False, rng=None):
        p = self.drop_prob if training else 0.0
        bits = None
        if p > 0.0 and len(self.weights) > 1:
            assert rng is not None, "rng required for training-mode dropout"
            keys = jax.random.split(rng, len(self.weights) - 1)
            bits = [jax.random.bits(k, (x.shape[0], int(w.shape[1])), jnp.uint32)
                    for k, w in zip(keys, self.weights[:-1])]
        return mlp_forward(x, self.weights, self.biases, drop_prob=p,
                           bits=bits, block_m=self.block_m,
                           compute_dtype=self.compute_dtype)


def _mlp_reference(x, weights, biases, bits=None, drop_prob=0.0):
    h = x
    n = len(weights)
    for i, (w, b) in enumerate(zip(weights, biases)):
        h = h @ w + b
        if i < n - 1:
            h = jnp.maximum(h, 0.0)
            if bits is not None and drop_prob > 0.0:
                thr = jnp.uint32(_dropout_threshold(drop_prob))
                h = jnp.where(bits[i] >= thr,
                              h * jnp.float32(1.0 / (1.0 - drop_prob)),
                              jnp.float32(0.0))
    return h


if __name__ == "__main__":
    key = jax.random.PRNGKey(0)
    k_x, k_net, k_xd, k_bits, k_xl, k_lin = jax.random.split(key, 6)

    # Small shapes consistent with the module defaults.
    batch, input_size = 2, 32
    x = jax.random.normal(k_x, (batch, input_size), dtype=jnp.float32)

    # 1) Spec-default MLP: hidden=(256, 256), output=1, ReLU, no norm/dropout.
    net = MLP(input_size, output_size=1, hidden_sizes=(256, 256),
              drop_prob=0.0, key=k_net)
    y = jax.block_until_ready(net(x))
    y_ref = _mlp_reference(x, net.weights, net.biases)
    assert y.shape == (batch, 1) and y.dtype == jnp.float32
    assert bool(jnp.allclose(y, y_ref, rtol=1e-2, atol=1e-2)), (y, y_ref)

    # 2) Training-mode dropout fused into the same kernel (exact given bits).
    p = 0.2
    xd = jax.random.normal(k_xd, (16, input_size), dtype=jnp.float32)
    bkeys = jax.random.split(k_bits, 2)
    bits = [jax.random.bits(bk, (16, 256), jnp.uint32) for bk in bkeys]
    y_do = jax.block_until_ready(
        mlp_forward(xd, net.weights, net.biases, drop_prob=p, bits=bits))
    y_do_ref = _mlp_reference(xd, net.weights, net.biases, bits=bits,
                              drop_prob=p)
    assert bool(jnp.allclose(y_do, y_do_ref, rtol=1e-2, atol=1e-2))

    # 3) Non-divisible batch: padded M, grid > 1 (exercises megacore split).
    xl = jax.random.normal(k_xl, (200, input_size), dtype=jnp.float32)
    y_l = jax.block_until_ready(
        mlp_forward(xl, net.weights, net.biases, block_m=128))
    y_l_ref = _mlp_reference(xl, net.weights, net.biases)
    assert y_l.shape == (200, 1)
    assert bool(jnp.allclose(y_l, y_l_ref, rtol=1e-2, atol=1e-2))

    # 4) bf16 compute path (f32 accumulation inside the kernel).
    y_bf = jax.block_until_ready(
        mlp_forward(xl, net.weights, net.biases, block_m=128,
                    compute_dtype=jnp.bfloat16))
    assert y_bf.dtype == jnp.float32
    assert bool(jnp.allclose(y_bf, y_l_ref, rtol=5e-2, atol=5e-2))

    # 5) Degenerate spec case: single bias-free Linear (hidden_sizes=()).
    net1 = MLP(input_size, output_size=8, hidden_sizes=(), key=k_lin)
    y1 = jax.block_until_ready(net1(x))
    y1_ref = x @ net1.weights[0]
    assert y1.shape == (batch, 8)
    assert bool(jnp.allclose(y1, y1_ref, rtol=1e-2, atol=1e-2))

    print("KERNEL_OK")
</pallas_src>

<mosaic_0001>
module attributes {stable_mosaic.version = 11 : i64} {
  func.func @_fused_mlp_kernel(%arg0: i32, %arg1: memref<2x32xf32, #tpu.memory_space<vmem>>, %arg2: memref<32x256xf32, #tpu.memory_space<vmem>>, %arg3: memref<256x256xf32, #tpu.memory_space<vmem>>, %arg4: memref<256x1xf32, #tpu.memory_space<vmem>>, %arg5: memref<1x256xf32, #tpu.memory_space<vmem>>, %arg6: memref<1x256xf32, #tpu.memory_space<vmem>>, %arg7: memref<1x1xf32, #tpu.memory_space<vmem>>, %arg8: memref<2x1xf32, #tpu.memory_space<vmem>>) attributes {dimension_semantics = [#tpu.dimension_semantics<parallel>], iteration_bounds = array<i64: 1>, scalar_prefetch = 0 : i64, scratch_operands = 0 : i64, tpu.core_type = #tpu.core_type<tc>, window_params = [{transform_indices = @transform_0, window_bounds = array<i64: 2, 32>}, {pipeline_mode = #tpu.pipeline_mode<synchronous>, transform_indices = @transform_1, window_bounds = array<i64: 32, 256>}, {pipeline_mode = #tpu.pipeline_mode<synchronous>, transform_indices = @transform_2, window_bounds = array<i64: 256, 256>}, {pipeline_mode = #tpu.pipeline_mode<synchronous>, transform_indices = @transform_3, window_bounds = array<i64: 256, 1>}, {pipeline_mode = #tpu.pipeline_mode<synchronous>, transform_indices = @transform_4, window_bounds = array<i64: 1, 256>}, {pipeline_mode = #tpu.pipeline_mode<synchronous>, transform_indices = @transform_5, window_bounds = array<i64: 1, 256>}, {pipeline_mode = #tpu.pipeline_mode<synchronous>, transform_indices = @transform_6, window_bounds = array<i64: 1, 1>}, {transform_indices = @transform_7, window_bounds = array<i64: 2, 1>}]} {
    %c0 = arith.constant 0 : index
    %c0_0 = arith.constant 0 : index
    %0 = vector.load %arg1[%c0, %c0_0] : memref<2x32xf32, #tpu.memory_space<vmem>>, vector<2x32xf32>
    %c0_1 = arith.constant 0 : index
    %c0_2 = arith.constant 0 : index
    %1 = vector.load %arg2[%c0_1, %c0_2] : memref<32x256xf32, #tpu.memory_space<vmem>>, vector<32x256xf32>
    %cst = arith.constant dense<0.000000e+00> : vector<2x256xf32>
    %2 = tpu.matmul %0, %1, %cst {dimension_numbers = #tpu.dot_dimension_numbers<[1], [0], [0], [1], [0, 0, 1, 1], [], []>} : vector<2x32xf32>, vector<32x256xf32>, vector<2x256xf32> -> vector<2x256xf32>
    %c0_3 = arith.constant 0 : index
    %c0_4 = arith.constant 0 : index
    %3 = vector.load %arg5[%c0_3, %c0_4] : memref<1x256xf32, #tpu.memory_space<vmem>>, vector<1x256xf32>
    %4 = vector.broadcast %3 : vector<1x256xf32> to vector<2x256xf32>
    %5 = arith.addf %2, %4 : vector<2x256xf32>
    %cst_5 = arith.constant 0.000000e+00 : f32
    %6 = vector.broadcast %cst_5 : f32 to vector<2x256xf32>
    %7 = arith.maximumf %5, %6 : vector<2x256xf32>
    %c0_6 = arith.constant 0 : index
    %c0_7 = arith.constant 0 : index
    %8 = vector.load %arg3[%c0_6, %c0_7] : memref<256x256xf32, #tpu.memory_space<vmem>>, vector<256x256xf32>
    %cst_8 = arith.constant dense<0.000000e+00> : vector<2x256xf32>
    %9 = tpu.matmul %7, %8, %cst_8 {dimension_numbers = #tpu.dot_dimension_numbers<[1], [0], [0], [1], [0, 0, 1, 1], [], []>} : vector<2x256xf32>, vector<256x256xf32>, vector<2x256xf32> -> vector<2x256xf32>
    %c0_9 = arith.constant 0 : index
    %c0_10 = arith.constant 0 : index
    %10 = vector.load %arg6[%c0_9, %c0_10] : memref<1x256xf32, #tpu.memory_space<vmem>>, vector<1x256xf32>
    %11 = vector.broadcast %10 : vector<1x256xf32> to vector<2x256xf32>
    %12 = arith.addf %9, %11 : vector<2x256xf32>
    %cst_11 = arith.constant 0.000000e+00 : f32
    %13 = vector.broadcast %cst_11 : f32 to vector<2x256xf32>
    %14 = arith.maximumf %12, %13 : vector<2x256xf32>
    %c0_12 = arith.constant 0 : index
    %c0_13 = arith.constant 0 : index
    %15 = vector.load %arg4[%c0_12, %c0_13] : memref<256x1xf32, #tpu.memory_space<vmem>>, vector<256x1xf32>
    %cst_14 = arith.constant dense<0.000000e+00> : vector<2x1xf32>
    %16 = tpu.matmul %14, %15, %cst_14 {dimension_numbers = #tpu.dot_dimension_numbers<[1], [0], [0], [1], [0, 0, 1, 1], [], []>} : vector<2x256xf32>, vector<256x1xf32>, vector<2x1xf32> -> vector<2x1xf32>
    %c0_15 = arith.constant 0 : index
    %c0_16 = arith.constant 0 : index
    %17 = vector.load %arg7[%c0_15, %c0_16] : memref<1x1xf32, #tpu.memory_space<vmem>>, vector<1x1xf32>
    %18 = vector.broadcast %17 : vector<1x1xf32> to vector<2x1xf32>
    %19 = arith.addf %16, %18 : vector<2x1xf32>
    %c0_17 = arith.constant 0 : index
    %c0_18 = arith.constant 0 : index
    %20 = vector.load %arg8[%c0_17, %c0_18] : memref<2x1xf32, #tpu.memory_space<vmem>>, vector<2x1xf32>
    tpu.vector_store %arg8[%c0_17, %c0_18], %19 {strides = array<i32>} : memref<2x1xf32, #tpu.memory_space<vmem>>, vector<2x1xf32>,
    return
  }
  func.func @transform_0(%arg0: i32) -> (i32, i32) {
    %c0_i32 = arith.constant 0 : i32
    %c0_i32_0 = arith.constant 0 : i32
    return %arg0, %c0_i32 : i32, i32
  }
  func.func @transform_1(%arg0: i32) -> (i32, i32) {
    %c0_i32 = arith.constant 0 : i32
    %c0_i32_0 = arith.constant 0 : i32
    %c0_i32_1 = arith.constant 0 : i32
    return %c0_i32, %c0_i32_0 : i32, i32
  }
  func.func @transform_2(%arg0: i32) -> (i32, i32) {
    %c0_i32 = arith.constant 0 : i32
    %c0_i32_0 = arith.constant 0 : i32
    %c0_i32_1 = arith.constant 0 : i32
    return %c0_i32, %c0_i32_0 : i32, i32
  }
  func.func @transform_3(%arg0: i32) -> (i32, i32) {
    %c0_i32 = arith.constant 0 : i32
    %c0_i32_0 = arith.constant 0 : i32
    %c0_i32_1 = arith.constant 0 : i32
    return %c0_i32, %c0_i32_0 : i32, i32
  }
  func.func @transform_4(%arg0: i32) -> (i32, i32) {
    %c0_i32 = arith.constant 0 : i32
    %c0_i32_0 = arith.constant 0 : i32
    %c0_i32_1 = arith.constant 0 : i32
    return %c0_i32, %c0_i32_0 : i32, i32
  }
  func.func @transform_5(%arg0: i32) -> (i32, i32) {
    %c0_i32 = arith.constant 0 : i32
    %c0_i32_0 = arith.constant 0 : i32
    %c0_i32_1 = arith.constant 0 : i32
    return %c0_i32, %c0_i32_0 : i32, i32
  }
  func.func @transform_6(%arg0: i32) -> (i32, i32) {
    %c0_i32 = arith.constant 0 : i32
    %c0_i32_0 = arith.constant 0 : i32
    %c0_i32_1 = arith.constant 0 : i32
    return %c0_i32, %c0_i32_0 : i32, i32
  }
  func.func @transform_7(%arg0: i32) -> (i32, i32) {
    %c0_i32 = arith.constant 0 : i32
    %c0_i32_0 = arith.constant 0 : i32
    return %arg0, %c0_i32 : i32, i32
  }
}

</mosaic_0001>

<llo_original>
// kernel: tpu_custom_call.1
$region0: #{tpu_custom_call.1}
  #allocation0 [shape = 'u32[]', space=smem, size = 0x4, offset = 0x4, fixed_abs, tag = 'smem constant byte address 0x4 - core index']
  #allocation1 [shape = 'u32[144,128]{1,0:T(1,128)}', space=vmem, size = 0x12000, scoped, tag = 'internal scratch']
  #allocation2 [shape = 'f32[1,1]{1,0:T(1,128)S(1)}', space=vmem, size = 0x200, scoped, tag = 'scoped memory for tpu_custom_call.1']
  %s0 = inlined_call_operand.vmem [shape: f32[2,32], index: 0, kind: input, shape index: {}]
  %s1 = inlined_call_operand.vmem [shape: f32[32,256], index: 1, kind: input, shape index: {}]
  %s2 = inlined_call_operand.hbm [shape: f32[256,256], index: 2, kind: input, shape index: {}]
  %s3 = inlined_call_operand.vmem [shape: f32[256,1], index: 3, kind: input, shape index: {}]
  %s4 = inlined_call_operand.vmem [shape: f32[1,256], index: 4, kind: input, shape index: {}]
  %s5 = inlined_call_operand.vmem [shape: f32[1,256], index: 5, kind: input, shape index: {}]
  %s6 = inlined_call_operand.<no memory space> [shape: f32[1,1], index: 6, kind: input, shape index: {}]
  %s7 = inlined_call_operand.vmem [shape: f32[2,1], index: 7, kind: output, shape index: {}]
  %s8 = sld [smem:[#allocation0]]
  $region42: #{tpu_custom_call.1} parent=0
    _
  %s10 = ssub.s32 1, %s8
  %s11 = scalar_select 0, %s10, %s8
  %v12 = vstv %s6
  %13 = vst [vmem:[#allocation2] sm:$0x1] %v12
  $region1: #{tpu_custom_call.1} parent=0
    #allocation3 [shape = 'u8[262144]{0}', space=vmem, size = 0x40000, scoped, tag = 'input window, operand 2, single buffered']
    #allocation4 [shape = 's32[1]{0}', space=sflag, size = 0x4, scoped, tag = 'scoped memory for tpu_custom_call.1']
    %14 = vsyncpa [#allocation4], 0
    // Predicated region
    $region2: #{tpu_custom_call.1} parent=1 // pred_check
      _
    $region3: #{tpu_custom_call.1} parent=1 // pred_check_branch
      %16 = sbr.rel (0) target = $region5
    $region4: #{tpu_custom_call.1} parent=1 // pred_region
      _
    $region5: #{tpu_custom_call.1} parent=1 // pred_fallthru
      _
    // Predicated region
    $region6: #{tpu_custom_call.1} parent=1 // pred_check
      _
    $region7: #{tpu_custom_call.1} parent=1 // pred_check_branch
      %18 = sbr.rel (0) target = $region9
    $region8: #{tpu_custom_call.1} parent=1 // pred_region
      _
    $region9: #{tpu_custom_call.1} parent=1 // pred_fallthru
      _
    // Predicated region
    $region10: #{tpu_custom_call.1} parent=1 // pred_check
      _
    $region11: #{tpu_custom_call.1} parent=1 // pred_check_branch
      %20 = sbr.rel (0) target = $region13
    $region12: #{tpu_custom_call.1} parent=1 // pred_region
      %s22 = ssub.s32 8192, 8192
      %23 = vsyncadd [#allocation4], %s22
      %s24 = sshll.u32 [#allocation3], 4
      %s25 = int_to_ptr.vmem [resolvable:$true] %s24
      %30 = dma.hbm_to_vmem [thread:$0]  %s2, 8192, %s25, [#allocation4], 256, 256, 16
    $region13: #{tpu_custom_call.1} parent=1 // pred_fallthru
      _
    // Predicated region
    $region14: #{tpu_custom_call.1} parent=1 // pred_check
      _
    $region15: #{tpu_custom_call.1} parent=1 // pred_check_branch
      %32 = sbr.rel (0) target = $region17
    $region16: #{tpu_custom_call.1} parent=1 // pred_region
      _
    $region17: #{tpu_custom_call.1} parent=1 // pred_fallthru
      _
    // Predicated region
    $region18: #{tpu_custom_call.1} parent=1 // pred_check
      _
    $region19: #{tpu_custom_call.1} parent=1 // pred_check_branch
      %34 = sbr.rel (0) target = $region21
    $region20: #{tpu_custom_call.1} parent=1 // pred_region
      _
    $region21: #{tpu_custom_call.1} parent=1 // pred_fallthru
      _
    // Predicated region
    $region22: #{tpu_custom_call.1} parent=1 // pred_check
      _
    $region23: #{tpu_custom_call.1} parent=1 // pred_check_branch
      %36 = sbr.rel (0) target = $region25
    $region24: #{tpu_custom_call.1} parent=1 // pred_region
      _
    $region25: #{tpu_custom_call.1} parent=1 // pred_fallthru
      _
    // Predicated region
    $region26: #{tpu_custom_call.1} parent=1 // pred_check
      _
    $region27: #{tpu_custom_call.1} parent=1 // pred_check_branch
      %38 = sbr.rel (0) target = $region29
    $region28: #{tpu_custom_call.1} parent=1 // pred_region
      _
    $region29: #{tpu_custom_call.1} parent=1 // pred_fallthru
      _
    // Predicated region
    $region30: #{tpu_custom_call.1} parent=1 // pred_check
      _
    $region31: #{tpu_custom_call.1} parent=1 // pred_check_branch
      %40 = sbr.rel (0) target = $region33
    $region32: #{tpu_custom_call.1} parent=1 // pred_region
      %41 = dma.done [#allocation4], 8192
    $region33: #{tpu_custom_call.1} parent=1 // pred_fallthru
      _
    %v42 = vld [vmem:[%s0] sm:$0x3]
    %v43 = vld [vmem:[%s1] sm:$0xff]
    %v44 = vld [vmem:[%s1 + $0x8] sm:$0xff]
    %v45 = vld [vmem:[%s1 + $0x10] sm:$0xff]
    %v46 = vld [vmem:[%s1 + $0x18] sm:$0xff]
    %v47 = vld [vmem:[%s1 + $0x20] sm:$0xff]
    %v48 = vld [vmem:[%s1 + $0x28] sm:$0xff]
    %v49 = vld [vmem:[%s1 + $0x30] sm:$0xff]
    %v50 = vld [vmem:[%s1 + $0x38] sm:$0xff]
    %v51 = vld [vmem:[%s4] sm:$0x3]
    %v53 = vlaneseq
    %v54 = vshrl.u32 %v53, 7
    %v55 = vsub.s32 0, %v54
    %v56 = vrot.slane %v51, %v55
    %v57 = vlaneseq
    %v58 = vshrl.u32 %v57, 7
    %v59 = vsub.s32 1, %v58
    %v60 = vrot.slane %v51, %v59
    %vm63 = vcmask 261120
    %v65 = vsel %vm63, %v42, 0
    %67 = vmatprep.subr.mxu0 %v44
    %68 = vmatpush1.msra.mxu0 %v43
    %69 = vmatprep.subr.mxu0 %v46
    %70 = vmatpush1.msra.mxu0 %v45
    %71 = vmatprep.subr.mxu0 %v48
    %72 = vmatpush1.msra.mxu0 %v47
    %73 = vmatprep.subr.mxu0 %v50
    %74 = vmatpush1.msra.mxu0 %v49
    %75 = vmatprep.subr.mxu0 0.0
    %76 = vmatpush1.msra.mxu0 0.0
    %77 = vmatprep.subr.mxu0 0.0
    %78 = vmatpush1.msra.mxu0 0.0
    %79 = vmatprep.subr.mxu0 0.0
    %80 = vmatpush1.msra.mxu0 0.0
    %81 = vmatprep.subr.mxu0 0.0
    %82 = vmatpush1.msra.mxu0 0.0
    %83 = vmatprep.subr.mxu0 0.0
    %84 = vmatpush1.msra.mxu0 0.0
    %85 = vmatprep.subr.mxu0 0.0
    %86 = vmatpush1.msra.mxu0 0.0
    %87 = vmatprep.subr.mxu0 0.0
    %88 = vmatpush1.msra.mxu0 0.0
    %89 = vmatprep.subr.mxu0 0.0
    %90 = vmatpush1.msra.mxu0 0.0
    %91 = vmatprep.subr.mxu0 0.0
    %92 = vmatpush1.msra.mxu0 0.0
    %93 = vmatprep.subr.mxu0 0.0
    %94 = vmatpush1.msra.mxu0 0.0
    %95 = vmatprep.subr.mxu0 0.0
    %96 = vmatpush1.msra.mxu0 0.0
    %97 = vmatprep.subr.mxu0 0.0
    %98 = vmatpush1.msra.mxu0 0.0
    %99 = vmatprep.subr.mxu0 0.0
    %100 = vmatpush1.msra.mxu0 0.0
    %101 = vmatprep.subr.mxu0 0.0
    %102 = vmatpush1.msra.mxu0 0.0
    %103 = vmatprep.subr.mxu0 0.0
    %104 = vmatpush1.msra.mxu0 0.0
    %105 = vmatprep.subr.mxu0 0.0
    %106 = vmatpush1.msra.mxu0 0.0
    %107 = vmatprep.subr.mxu0 0.0
    %108 = vmatpush1.msra.mxu0 0.0
    %109 = vmatprep.subr.mxu0 0.0
    %110 = vmatpush1.msra.mxu0 0.0
    %111 = vmatprep.subr.mxu0 0.0
    %112 = vmatpush1.msra.mxu0 0.0
    %113 = vmatprep.subr.mxu0 0.0
    %114 = vmatpush1.msra.mxu0 0.0
    %115 = vmatprep.subr.mxu0 0.0
    %116 = vmatpush1.msra.mxu0 0.0
    %117 = vmatprep.subr.mxu0 0.0
    %118 = vmatpush1.msra.mxu0 0.0
    %119 = vmatprep.subr.mxu0 0.0
    %120 = vmatpush1.msra.mxu0 0.0
    %121 = vmatprep.subr.mxu0 0.0
    %122 = vmatpush1.msra.mxu0 0.0
    %123 = vmatprep.subr.mxu0 0.0
    %124 = vmatpush1.msra.mxu0 0.0
    %125 = vmatprep.subr.mxu0 0.0
    %126 = vmatpush1.msra.mxu0 0.0
    %127 = vmatprep.subr.mxu0 0.0
    %128 = vmatpush1.msra.mxu0 0.0
    %129 = vmatprep.subr.mxu0 0.0
    %130 = vmatpush1.msra.mxu0 0.0
    %131 = vmatprep.mubr.f32.mxu0 0.0
    %132 = vmatmul.mubr.f32.gmra.mrb[0].mxu0 %v65
    %v133 = vpop.f32.mrb[0].mxu0
    %v134 = vadd.f32 %v56, %v133
    %v135 = vpop.f32.mrb[0].mxu0
    %v136 = vadd.f32 %v60, %v135
    %137 = vdwg.mxu0
    %v138 = vmax.f32 %v134, 0.0
    %v139 = vmax.f32 %v136, 0.0
    %v140 = vld [vmem:[#allocation3] sm:$0xff]
    %v141 = vld [vmem:[#allocation3 + $0x8] sm:$0xff]
    %v142 = vld [vmem:[#allocation3 + $0x10] sm:$0xff]
    %v143 = vld [vmem:[#allocation3 + $0x18] sm:$0xff]
    %v144 = vld [vmem:[#allocation3 + $0x20] sm:$0xff]
    %v145 = vld [vmem:[#allocation3 + $0x28] sm:$0xff]
    %v146 = vld [vmem:[#allocation3 + $0x30] sm:$0xff]
    %v147 = vld [vmem:[#allocation3 + $0x38] sm:$0xff]
    %v148 = vld [vmem:[#allocation3 + $0x40] sm:$0xff]
    %v149 = vld [vmem:[#allocation3 + $0x48] sm:$0xff]
    %v150 = vld [vmem:[#allocation3 + $0x50] sm:$0xff]
    %v151 = vld [vmem:[#allocation3 + $0x58] sm:$0xff]
    %v152 = vld [vmem:[#allocation3 + $0x60] sm:$0xff]
    %v153 = vld [vmem:[#allocation3 + $0x68] sm:$0xff]
    %v154 = vld [vmem:[#allocation3 + $0x70] sm:$0xff]
    %v155 = vld [vmem:[#allocation3 + $0x78] sm:$0xff]
    %v156 = vld [vmem:[#allocation3 + $0x80] sm:$0xff]
    %v157 = vld [vmem:[#allocation3 + $0x88] sm:$0xff]
    %v158 = vld [vmem:[#allocation3 + $0x90] sm:$0xff]
    %v159 = vld [vmem:[#allocation3 + $0x98] sm:$0xff]
    %v160 = vld [vmem:[#allocation3 + $0xa0] sm:$0xff]
    %v161 = vld [vmem:[#allocation3 + $0xa8] sm:$0xff]
    %v162 = vld [vmem:[#allocation3 + $0xb0] sm:$0xff]
    %v163 = vld [vmem:[#allocation3 + $0xb8] sm:$0xff]
    %v164 = vld [vmem:[#allocation3 + $0xc0] sm:$0xff]
    %v165 = vld [vmem:[#allocation3 + $0xc8] sm:$0xff]
    %v166 = vld [vmem:[#allocation3 + $0xd0] sm:$0xff]
    %v167 = vld [vmem:[#allocation3 + $0xd8] sm:$0xff]
    %v168 = vld [vmem:[#allocation3 + $0xe0] sm:$0xff]
    %v169 = vld [vmem:[#allocation3 + $0xe8] sm:$0xff]
    %v170 = vld [vmem:[#allocation3 + $0xf0] sm:$0xff]
    %v171 = vld [vmem:[#allocation3 + $0xf8] sm:$0xff]
    %v172 = vld [vmem:[#allocation3 + $0x100] sm:$0xff]
    %v173 = vld [vmem:[#allocation3 + $0x108] sm:$0xff]
    %v174 = vld [vmem:[#allocation3 + $0x110] sm:$0xff]
    %v175 = vld [vmem:[#allocation3 + $0x118] sm:$0xff]
    %v176 = vld [vmem:[#allocation3 + $0x120] sm:$0xff]
    %v177 = vld [vmem:[#allocation3 + $0x128] sm:$0xff]
    %v178 = vld [vmem:[#allocation3 + $0x130] sm:$0xff]
    %v179 = vld [vmem:[#allocation3 + $0x138] sm:$0xff]
    %v180 = vld [vmem:[#allocation3 + $0x140] sm:$0xff]
    %v181 = vld [vmem:[#allocation3 + $0x148] sm:$0xff]
    %v182 = vld [vmem:[#allocation3 + $0x150] sm:$0xff]
    %v183 = vld [vmem:[#allocation3 + $0x158] sm:$0xff]
    %v184 = vld [vmem:[#allocation3 + $0x160] sm:$0xff]
    %v185 = vld [vmem:[#allocation3 + $0x168] sm:$0xff]
    %v186 = vld [vmem:[#allocation3 + $0x170] sm:$0xff]
    %v187 = vld [vmem:[#allocation3 + $0x178] sm:$0xff]
    %v188 = vld [vmem:[#allocation3 + $0x180] sm:$0xff]
    %v189 = vld [vmem:[#allocation3 + $0x188] sm:$0xff]
    %v190 = vld [vmem:[#allocation3 + $0x190] sm:$0xff]
    %v191 = vld [vmem:[#allocation3 + $0x198] sm:$0xff]
    %v192 = vld [vmem:[#allocation3 + $0x1a0] sm:$0xff]
    %v193 = vld [vmem:[#allocation3 + $0x1a8] sm:$0xff]
    %v194 = vld [vmem:[#allocation3 + $0x1b0] sm:$0xff]
    %v195 = vld [vmem:[#allocation3 + $0x1b8] sm:$0xff]
    %v196 = vld [vmem:[#allocation3 + $0x1c0] sm:$0xff]
    %v197 = vld [vmem:[#allocation3 + $0x1c8] sm:$0xff]
    %v198 = vld [vmem:[#allocation3 + $0x1d0] sm:$0xff]
    %v199 = vld [vmem:[#allocation3 + $0x1d8] sm:$0xff]
    %v200 = vld [vmem:[#allocation3 + $0x1e0] sm:$0xff]
    %v201 = vld [vmem:[#allocation3 + $0x1e8] sm:$0xff]
    %v202 = vld [vmem:[#allocation3 + $0x1f0] sm:$0xff]
    %v203 = vld [vmem:[#allocation3 + $0x1f8] sm:$0xff]
    %v204 = vld [vmem:[%s5] sm:$0x3]
    %v206 = vlaneseq
    %v207 = vshrl.u32 %v206, 7
    %v208 = vsub.s32 0, %v207
    %v209 = vrot.slane %v204, %v208
    %v210 = vlaneseq
    %v211 = vshrl.u32 %v210, 7
    %v212 = vsub.s32 1, %v211
    %v213 = vrot.slane %v204, %v212
    %216 = vmatprep.subr.mxu0 %v141
    %217 = vmatpush1.msra.mxu0 %v140
    %218 = vmatprep.subr.mxu0 %v143
    %219 = vmatpush1.msra.mxu0 %v142
    %220 = vmatprep.subr.mxu0 %v145
    %221 = vmatpush1.msra.mxu0 %v144
    %222 = vmatprep.subr.mxu0 %v147
    %223 = vmatpush1.msra.mxu0 %v146
    %224 = vmatprep.subr.mxu0 %v149
    %225 = vmatpush1.msra.mxu0 %v148
    %226 = vmatprep.subr.mxu0 %v151
    %227 = vmatpush1.msra.mxu0 %v150
    %228 = vmatprep.subr.mxu0 %v153
    %229 = vmatpush1.msra.mxu0 %v152
    %230 = vmatprep.subr.mxu0 %v155
    %231 = vmatpush1.msra.mxu0 %v154
    %232 = vmatprep.subr.mxu0 %v157
    %233 = vmatpush1.msra.mxu0 %v156
    %234 = vmatprep.subr.mxu0 %v159
    %235 = vmatpush1.msra.mxu0 %v158
    %236 = vmatprep.subr.mxu0 %v161
    %237 = vmatpush1.msra.mxu0 %v160
    %238 = vmatprep.subr.mxu0 %v163
    %239 = vmatpush1.msra.mxu0 %v162
    %240 = vmatprep.subr.mxu0 %v165
    %241 = vmatpush1.msra.mxu0 %v164
    %242 = vmatprep.subr.mxu0 %v167
    %243 = vmatpush1.msra.mxu0 %v166
    %244 = vmatprep.subr.mxu0 %v169
    %245 = vmatpush1.msra.mxu0 %v168
    %246 = vmatprep.subr.mxu0 %v171
    %247 = vmatpush1.msra.mxu0 %v170
    %248 = vmatprep.subr.mxu0 %v173
    %249 = vmatpush1.msra.mxu0 %v172
    %250 = vmatprep.subr.mxu0 %v175
    %251 = vmatpush1.msra.mxu0 %v174
    %252 = vmatprep.subr.mxu0 %v177
    %253 = vmatpush1.msra.mxu0 %v176
    %254 = vmatprep.subr.mxu0 %v179
    %255 = vmatpush1.msra.mxu0 %v178
    %256 = vmatprep.subr.mxu0 %v181
    %257 = vmatpush1.msra.mxu0 %v180
    %258 = vmatprep.subr.mxu0 %v183
    %259 = vmatpush1.msra.mxu0 %v182
    %260 = vmatprep.subr.mxu0 %v185
    %261 = vmatpush1.msra.mxu0 %v184
    %262 = vmatprep.subr.mxu0 %v187
    %263 = vmatpush1.msra.mxu0 %v186
    %264 = vmatprep.subr.mxu0 %v189
    %265 = vmatpush1.msra.mxu0 %v188
    %266 = vmatprep.subr.mxu0 %v191
    %267 = vmatpush1.msra.mxu0 %v190
    %268 = vmatprep.subr.mxu0 %v193
    %269 = vmatpush1.msra.mxu0 %v192
    %270 = vmatprep.subr.mxu0 %v195
    %271 = vmatpush1.msra.mxu0 %v194
    %272 = vmatprep.subr.mxu0 %v197
    %273 = vmatpush1.msra.mxu0 %v196
    %274 = vmatprep.subr.mxu0 %v199
    %275 = vmatpush1.msra.mxu0 %v198
    %276 = vmatprep.subr.mxu0 %v201
    %277 = vmatpush1.msra.mxu0 %v200
    %278 = vmatprep.subr.mxu0 %v203
    %279 = vmatpush1.msra.mxu0 %v202
    %280 = vmatprep.mubr.f32.mxu0 %v139
    %281 = vmatmul.mubr.f32.gmra.mrb[0].mxu0 %v138
    %v282 = vpop.f32.mrb[0].mxu0
    %v283 = vadd.f32 %v209, %v282
    %v284 = vpop.f32.mrb[0].mxu0
    %v285 = vadd.f32 %v213, %v284
    %286 = vdwg.mxu0
    %v287 = vmax.f32 %v283, 0.0
    %v288 = vmax.f32 %v285, 0.0
    %v289 = vld [vmem:[%s3] sm:$0xff]
    %v290 = vld [vmem:[%s3 + $0x8] sm:$0xff]
    %v291 = vld [vmem:[%s3 + $0x10] sm:$0xff]
    %v292 = vld [vmem:[%s3 + $0x18] sm:$0xff]
    %v293 = vld [vmem:[%s3 + $0x20] sm:$0xff]
    %v294 = vld [vmem:[%s3 + $0x28] sm:$0xff]
    %v295 = vld [vmem:[%s3 + $0x30] sm:$0xff]
    %v296 = vld [vmem:[%s3 + $0x38] sm:$0xff]
    %v297 = vld [vmem:[%s3 + $0x40] sm:$0xff]
    %v298 = vld [vmem:[%s3 + $0x48] sm:$0xff]
    %v299 = vld [vmem:[%s3 + $0x50] sm:$0xff]
    %v300 = vld [vmem:[%s3 + $0x58] sm:$0xff]
    %v301 = vld [vmem:[%s3 + $0x60] sm:$0xff]
    %v302 = vld [vmem:[%s3 + $0x68] sm:$0xff]
    %v303 = vld [vmem:[%s3 + $0x70] sm:$0xff]
    %v304 = vld [vmem:[%s3 + $0x78] sm:$0xff]
    %v305 = vld [vmem:[%s3 + $0x80] sm:$0xff]
    %v306 = vld [vmem:[%s3 + $0x88] sm:$0xff]
    %v307 = vld [vmem:[%s3 + $0x90] sm:$0xff]
    %v308 = vld [vmem:[%s3 + $0x98] sm:$0xff]
    %v309 = vld [vmem:[%s3 + $0xa0] sm:$0xff]
    %v310 = vld [vmem:[%s3 + $0xa8] sm:$0xff]
    %v311 = vld [vmem:[%s3 + $0xb0] sm:$0xff]
    %v312 = vld [vmem:[%s3 + $0xb8] sm:$0xff]
    %v313 = vld [vmem:[%s3 + $0xc0] sm:$0xff]
    %v314 = vld [vmem:[%s3 + $0xc8] sm:$0xff]
    %v315 = vld [vmem:[%s3 + $0xd0] sm:$0xff]
    %v316 = vld [vmem:[%s3 + $0xd8] sm:$0xff]
    %v317 = vld [vmem:[%s3 + $0xe0] sm:$0xff]
    %v318 = vld [vmem:[%s3 + $0xe8] sm:$0xff]
    %v319 = vld [vmem:[%s3 + $0xf0] sm:$0xff]
    %v320 = vld [vmem:[%s3 + $0xf8] sm:$0xff]
    %v321 = vld [vmem:[#allocation2] sm:$0x1]
    %v323 = vlaneseq
    %v324 = vshrl.u32 %v323, 7
    %v325 = vsub.s32 0, %v324
    %v326 = vrot.slane %v321, %v325
    %328 = vmatprep.subr.mxu0 0.0
    %329 = vmatpush1.msra.mxu0 %v289
    %330 = vmatprep.subr.mxu0 0.0
    %331 = vmatpush1.msra.mxu0 %v290
    %332 = vmatprep.subr.mxu0 0.0
    %333 = vmatpush1.msra.mxu0 %v291
    %334 = vmatprep.subr.mxu0 0.0
    %335 = vmatpush1.msra.mxu0 %v292
    %336 = vmatprep.subr.mxu0 0.0
    %337 = vmatpush1.msra.mxu0 %v293
    %338 = vmatprep.subr.mxu0 0.0
    %339 = vmatpush1.msra.mxu0 %v294
    %340 = vmatprep.subr.mxu0 0.0
    %341 = vmatpush1.msra.mxu0 %v295
    %342 = vmatprep.subr.mxu0 0.0
    %343 = vmatpush1.msra.mxu0 %v296
    %344 = vmatprep.subr.mxu0 0.0
    %345 = vmatpush1.msra.mxu0 %v297
    %346 = vmatprep.subr.mxu0 0.0
    %347 = vmatpush1.msra.mxu0 %v298
    %348 = vmatprep.subr.mxu0 0.0
    %349 = vmatpush1.msra.mxu0 %v299
    %350 = vmatprep.subr.mxu0 0.0
    %351 = vmatpush1.msra.mxu0 %v300
    %352 = vmatprep.subr.mxu0 0.0
    %353 = vmatpush1.msra.mxu0 %v301
    %354 = vmatprep.subr.mxu0 0.0
    %355 = vmatpush1.msra.mxu0 %v302
    %356 = vmatprep.subr.mxu0 0.0
    %357 = vmatpush1.msra.mxu0 %v303
    %358 = vmatprep.subr.mxu0 0.0
    %359 = vmatpush1.msra.mxu0 %v304
    %360 = vmatprep.subr.mxu0 0.0
    %361 = vmatpush1.msra.mxu0 %v305
    %362 = vmatprep.subr.mxu0 0.0
    %363 = vmatpush1.msra.mxu0 %v306
    %364 = vmatprep.subr.mxu0 0.0
    %365 = vmatpush1.msra.mxu0 %v307
    %366 = vmatprep.subr.mxu0 0.0
    %367 = vmatpush1.msra.mxu0 %v308
    %368 = vmatprep.subr.mxu0 0.0
    %369 = vmatpush1.msra.mxu0 %v309
    %370 = vmatprep.subr.mxu0 0.0
    %371 = vmatpush1.msra.mxu0 %v310
    %372 = vmatprep.subr.mxu0 0.0
    %373 = vmatpush1.msra.mxu0 %v311
    %374 = vmatprep.subr.mxu0 0.0
    %375 = vmatpush1.msra.mxu0 %v312
    %376 = vmatprep.subr.mxu0 0.0
    %377 = vmatpush1.msra.mxu0 %v313
    %378 = vmatprep.subr.mxu0 0.0
    %379 = vmatpush1.msra.mxu0 %v314
    %380 = vmatprep.subr.mxu0 0.0
    %381 = vmatpush1.msra.mxu0 %v315
    %382 = vmatprep.subr.mxu0 0.0
    %383 = vmatpush1.msra.mxu0 %v316
    %384 = vmatprep.subr.mxu0 0.0
    %385 = vmatpush1.msra.mxu0 %v317
    %386 = vmatprep.subr.mxu0 0.0
    %387 = vmatpush1.msra.mxu0 %v318
    %388 = vmatprep.subr.mxu0 0.0
    %389 = vmatpush1.msra.mxu0 %v319
    %390 = vmatprep.subr.mxu0 0.0
    %391 = vmatpush1.msra.mxu0 %v320
    %392 = vmatprep.mubr.f32.mxu0 %v288
    %393 = vmatmul.mubr.f32.gmra.mrb[0].mxu0 %v287
    %v394 = vpop.f32.mrb[0].mxu0
    %v395 = vadd.f32 %v326, %v394
    %v396 = vpop.f32.mrb[0].mxu0
    %397 = vdwg.mxu0
    %vm398 = vcmask 1024
    %399 = vst.msk [vmem:[%s7] sm:$0x3] %vm398, %v395
    // Predicated region
    $region34: #{tpu_custom_call.1} parent=1 // pred_check
      _
    $region35: #{tpu_custom_call.1} parent=1 // pred_check_branch
      %401 = sbr.rel (0) target = $region37
    $region36: #{tpu_custom_call.1} parent=1 // pred_region
      _
    $region37: #{tpu_custom_call.1} parent=1 // pred_fallthru
      _
    // Predicated region
    $region38: #{tpu_custom_call.1} parent=1 // pred_check
      _
    $region39: #{tpu_custom_call.1} parent=1 // pred_check_branch
      %403 = sbr.rel (0) target = $region41
    $region40: #{tpu_custom_call.1} parent=1 // pred_region
      _
    $region41: #{tpu_custom_call.1} parent=1 // pred_fallthru
      _
    %404 = vsyncpa [#allocation4], 1

</llo_original>
